<compile_context>
chip_gen: v6e
topology: v6e:2x2x1
jax: 0.10.0
libtpu: 0.0.40
codegen_flags: <defaults>
</compile_context>

<pallas_src>
import functools

import jax
import jax.numpy as jnp
from jax import lax
from jax.experimental import pallas as pl
from jax.experimental.pallas import tpu as pltpu


def _round_up(x, m):
    return (x + m - 1) // m * m


# ---------------------------------------------------------------------------
# Pallas kernel: fused label-smoothing cross-entropy over one batch tile.
# pred_ref: (tb, Cp) input dtype, tgt_ref: (tb, 1) i32, out_ref: (1, 1) f32.
# ---------------------------------------------------------------------------
def _label_smoothing_kernel(pred_ref, tgt_ref, out_ref, *,
                            num_classes, batch, smoothing):
    i = pl.program_id(0)
    logits = pred_ref[...].astype(jnp.float32)             # (tb, Cp)
    tb, cp = logits.shape

    col = lax.broadcasted_iota(jnp.int32, (tb, cp), 1)
    row = lax.broadcasted_iota(jnp.int32, (tb, cp), 0) + i * tb
    col_ok = col < num_classes
    valid = col_ok & (row < batch)

    # Numerically stable, class-masked log-softmax along the lane axis.
    neg_big = jnp.float32(-1e30)
    masked = jnp.where(col_ok, logits, neg_big)
    m = jnp.max(masked, axis=-1, keepdims=True)
    e = jnp.exp(masked - m)                                 # padded lanes -> 0
    denom = jnp.sum(e, axis=-1, keepdims=True)
    logp = (logits - m) - jnp.log(denom)                    # finite everywhere

    # smooth_label = smoothing/(C-1) everywhere, confidence at the target col.
    conf = jnp.float32(1.0 - smoothing)
    off = jnp.float32(smoothing / (num_classes - 1))
    tgt = tgt_ref[...]                                      # (tb, 1) int32
    smooth = jnp.where(col == tgt, conf, off)

    contrib = jnp.where(valid, smooth * logp, jnp.float32(0.0))
    part = jnp.sum(jnp.sum(contrib, axis=1, keepdims=True),
                   axis=0, keepdims=True)                   # (1, 1)

    @pl.when(i == 0)
    def _():
        out_ref[...] = jnp.zeros_like(out_ref)

    # Accumulate the (already mean-scaled, negated) contribution into the
    # VMEM-resident output block.
    out_ref[...] += part * jnp.float32(-1.0 / batch)


@functools.partial(jax.jit, static_argnames=("smoothing",))
def label_smoothing_loss(pred, target, smoothing=0.1):
    """mean_b( sum_c( -smooth_label * log_softmax(pred) ) ), fused on TPU."""
    B, C = pred.shape
    Cp = _round_up(C, 128)                   # lane-dense class axis

    # Batch tile: multiple of 8 sublanes, sized so a (tb, Cp) f32 block stays
    # well inside VMEM even with double-buffering and very large class counts.
    bytes_per_row = Cp * 4
    budget = 8 * 1024 * 1024                 # per pred block (x2 buffers)
    tb = max(8, min(512, (budget // bytes_per_row) // 8 * 8))
    tb = min(tb, _round_up(B, 8))
    Bp = _round_up(B, tb)

    pred_p = pred
    if (Bp, Cp) != (B, C):
        pred_p = jnp.pad(pred, ((0, Bp - B), (0, Cp - C)))
    tgt_p = target.astype(jnp.int32)
    if Bp != B:
        tgt_p = jnp.pad(tgt_p, ((0, Bp - B),))
    tgt_p = tgt_p.reshape(Bp, 1)

    out = pl.pallas_call(
        functools.partial(_label_smoothing_kernel, num_classes=C, batch=B,
                          smoothing=float(smoothing)),
        out_shape=jax.ShapeDtypeStruct((1, 1), jnp.float32),
        grid=(Bp // tb,),
        in_specs=[
            pl.BlockSpec((tb, Cp), lambda i: (i, 0)),
            pl.BlockSpec((tb, 1), lambda i: (i, 0)),
        ],
        out_specs=pl.BlockSpec((1, 1), lambda i: (0, 0)),
        compiler_params=pltpu.CompilerParams(
            dimension_semantics=("arbitrary",),    # batch axis is a reduction
            vmem_limit_bytes=64 * 1024 * 1024),
    )(pred_p, tgt_p)
    return out[0, 0]


# ---------------------------------------------------------------------------
# Pure-JAX reference (mirrors the PyTorch forward exactly).
# ---------------------------------------------------------------------------
def _reference(pred, target, smoothing=0.1):
    C = pred.shape[1]
    confidence = 1.0 - smoothing
    smooth = jnp.full_like(pred, smoothing / (C - 1))
    smooth = smooth.at[jnp.arange(pred.shape[0]), target].set(confidence)
    logp = jax.nn.log_softmax(pred, axis=1)
    return jnp.mean(jnp.sum(-smooth * logp, axis=1))


if __name__ == "__main__":
    B, num_classes = 6, 5
    key = jax.random.PRNGKey(0)
    k1, k2 = jax.random.split(key)
    pred = jax.random.normal(k1, (B, num_classes), jnp.float32)
    target = jax.random.randint(k2, (B,), 0, num_classes)

    loss = label_smoothing_loss(pred, target, smoothing=0.1)
    jax.block_until_ready(loss)

    ref = _reference(pred, target, 0.1)
    assert loss.shape == ()
    assert bool(jnp.isfinite(loss))
    assert bool(jnp.allclose(loss, ref, rtol=1e-5, atol=1e-5)), (loss, ref)
    print("KERNEL_OK")
</pallas_src>

<mosaic_0001>
module attributes {stable_mosaic.version = 11 : i64} {
  func.func @_label_smoothing_kernel(%arg0: i32, %arg1: memref<8x128xf32, #tpu.memory_space<vmem>>, %arg2: memref<8x1xi32, #tpu.memory_space<vmem>>, %arg3: memref<1x1xf32, #tpu.memory_space<vmem>>) attributes {dimension_semantics = [#tpu.dimension_semantics<arbitrary>], iteration_bounds = array<i64: 1>, scalar_prefetch = 0 : i64, scratch_operands = 0 : i64, tpu.core_type = #tpu.core_type<tc>, window_params = [{transform_indices = @transform_0, window_bounds = array<i64: 8, 128>}, {transform_indices = @transform_1, window_bounds = array<i64: 8, 1>}, {pipeline_mode = #tpu.pipeline_mode<synchronous>, transform_indices = @transform_2, window_bounds = array<i64: 1, 1>}]} {
    %c0 = arith.constant 0 : index
    %c0_0 = arith.constant 0 : index
    %0 = vector.load %arg1[%c0, %c0_0] : memref<8x128xf32, #tpu.memory_space<vmem>>, vector<8x128xf32>
    %1 = tpu.iota {dimensions = array<i32: 1>} : vector<8x128xi32>
    %2 = tpu.iota {dimensions = array<i32: 0>} : vector<8x128xi32>
    %c8_i32 = arith.constant 8 : i32
    %3 = arith.muli %arg0, %c8_i32 : i32
    %4 = vector.broadcast %3 : i32 to vector<8x128xi32>
    %5 = arith.addi %2, %4 : vector<8x128xi32>
    %c5_i32 = arith.constant 5 : i32
    %6 = vector.broadcast %c5_i32 : i32 to vector<8x128xi32>
    %7 = arith.cmpi slt, %1, %6 : vector<8x128xi32>
    %c6_i32 = arith.constant 6 : i32
    %8 = vector.broadcast %c6_i32 : i32 to vector<8x128xi32>
    %9 = arith.cmpi slt, %5, %8 : vector<8x128xi32>
    %10 = arith.andi %7, %9 : vector<8x128xi1>
    %cst = arith.constant -1.000000e+30 : f32
    %11 = vector.broadcast %cst : f32 to vector<8x128xf32>
    %12 = arith.select %7, %0, %11 : vector<8x128xi1>, vector<8x128xf32>
    %cst_1 = arith.constant dense<0xFF800000> : vector<8xf32>
    %13 = vector.multi_reduction <maximumf>, %12, %cst_1 [1] : vector<8x128xf32> to vector<8xf32>
    %14 = vector.shape_cast %13 : vector<8xf32> to vector<8x1xf32>
    %15 = vector.broadcast %14 : vector<8x1xf32> to vector<8x128xf32>
    %16 = arith.subf %12, %15 : vector<8x128xf32>
    %17 = math.exp %16 : vector<8x128xf32>
    %cst_2 = arith.constant dense<0.000000e+00> : vector<8xf32>
    %18 = vector.multi_reduction <add>, %17, %cst_2 [1] : vector<8x128xf32> to vector<8xf32>
    %19 = vector.shape_cast %18 : vector<8xf32> to vector<8x1xf32>
    %20 = vector.broadcast %14 : vector<8x1xf32> to vector<8x128xf32>
    %21 = arith.subf %0, %20 : vector<8x128xf32>
    %22 = math.log %19 : vector<8x1xf32>
    %23 = vector.broadcast %22 : vector<8x1xf32> to vector<8x128xf32>
    %24 = arith.subf %21, %23 : vector<8x128xf32>
    %c0_3 = arith.constant 0 : index
    %c0_4 = arith.constant 0 : index
    %25 = vector.load %arg2[%c0_3, %c0_4] : memref<8x1xi32, #tpu.memory_space<vmem>>, vector<8x1xi32>
    %26 = vector.broadcast %25 : vector<8x1xi32> to vector<8x128xi32>
    %27 = arith.cmpi eq, %1, %26 : vector<8x128xi32>
    %cst_5 = arith.constant 0.899999976 : f32
    %cst_6 = arith.constant 2.500000e-02 : f32
    %28 = vector.broadcast %cst_5 : f32 to vector<8x128xf32>
    %29 = vector.broadcast %cst_6 : f32 to vector<8x128xf32>
    %30 = arith.select %27, %28, %29 : vector<8x128xi1>, vector<8x128xf32>
    %31 = arith.mulf %30, %24 : vector<8x128xf32>
    %cst_7 = arith.constant 0.000000e+00 : f32
    %32 = vector.broadcast %cst_7 : f32 to vector<8x128xf32>
    %33 = arith.select %10, %31, %32 : vector<8x128xi1>, vector<8x128xf32>
    %cst_8 = arith.constant dense<0.000000e+00> : vector<8xf32>
    %34 = vector.multi_reduction <add>, %33, %cst_8 [1] : vector<8x128xf32> to vector<8xf32>
    %35 = vector.shape_cast %34 : vector<8xf32> to vector<8x1xf32>
    %cst_9 = arith.constant dense<0.000000e+00> : vector<1xf32>
    %36 = vector.multi_reduction <add>, %35, %cst_9 [0] : vector<8x1xf32> to vector<1xf32>
    %37 = vector.shape_cast %36 : vector<1xf32> to vector<1x1xf32>
    %c0_i32 = arith.constant 0 : i32
    %38 = arith.cmpi eq, %arg0, %c0_i32 : i32
    %39 = arith.extui %38 : i1 to i32
    %c0_i32_10 = arith.constant 0 : i32
    %40 = arith.cmpi ne, %39, %c0_i32_10 : i32
    scf.if %40 {
      %cst_16 = arith.constant 0.000000e+00 : f32
      %46 = vector.broadcast %cst_16 : f32 to vector<1x1xf32>
      %c0_17 = arith.constant 0 : index
      %c0_18 = arith.constant 0 : index
      %47 = vector.load %arg3[%c0_17, %c0_18] : memref<1x1xf32, #tpu.memory_space<vmem>>, vector<1x1xf32>
      tpu.vector_store %arg3[%c0_17, %c0_18], %46 {strides = array<i32>} : memref<1x1xf32, #tpu.memory_space<vmem>>, vector<1x1xf32>,
    } else {
    }
    %c0_11 = arith.constant 0 : index
    %c0_12 = arith.constant 0 : index
    %41 = vector.load %arg3[%c0_11, %c0_12] : memref<1x1xf32, #tpu.memory_space<vmem>>, vector<1x1xf32>
    %cst_13 = arith.constant -0.166666672 : f32
    %42 = vector.broadcast %cst_13 : f32 to vector<1x1xf32>
    %43 = arith.mulf %37, %42 : vector<1x1xf32>
    %44 = arith.addf %41, %43 : vector<1x1xf32>
    %c0_14 = arith.constant 0 : index
    %c0_15 = arith.constant 0 : index
    %45 = vector.load %arg3[%c0_14, %c0_15] : memref<1x1xf32, #tpu.memory_space<vmem>>, vector<1x1xf32>
    tpu.vector_store %arg3[%c0_14, %c0_15], %44 {strides = array<i32>} : memref<1x1xf32, #tpu.memory_space<vmem>>, vector<1x1xf32>,
    return
  }
  func.func @transform_0(%arg0: i32) -> (i32, i32) {
    %c0_i32 = arith.constant 0 : i32
    %c0_i32_0 = arith.constant 0 : i32
    return %arg0, %c0_i32 : i32, i32
  }
  func.func @transform_1(%arg0: i32) -> (i32, i32) {
    %c0_i32 = arith.constant 0 : i32
    %c0_i32_0 = arith.constant 0 : i32
    return %arg0, %c0_i32 : i32, i32
  }
  func.func @transform_2(%arg0: i32) -> (i32, i32) {
    %c0_i32 = arith.constant 0 : i32
    %c0_i32_0 = arith.constant 0 : i32
    %c0_i32_1 = arith.constant 0 : i32
    return %c0_i32, %c0_i32_0 : i32, i32
  }
}

</mosaic_0001>

<llo_original>
// kernel: label_smoothing_loss.1
$region0: #{label_smoothing_loss.1}
  #allocation0 [shape = 'u32[]', space=smem, size = 0x4, offset = 0x4, fixed_abs, tag = 'smem constant byte address 0x4 - core index']
  #allocation1 [shape = 'u32[144,128]{1,0:T(1,128)}', space=vmem, size = 0x12000, scoped, tag = 'internal scratch']
  %s0 = inlined_call_operand.vmem [shape: f32[8,128], index: 0, kind: input, shape index: {}]
  %s1 = inlined_call_operand.vmem [shape: s32[8,1], index: 1, kind: input, shape index: {}]
  %s2 = inlined_call_operand.hbm [shape: f32[1,1], index: 2, kind: output, shape index: {}]
  %s3 = sld [smem:[#allocation0]]
  $region22: #{label_smoothing_loss.1} parent=0
    _
  %s5 = ssub.s32 1, %s3
  %s6 = scalar_select 0, %s5, %s3
  $region1: #{label_smoothing_loss.1} parent=0
    #allocation2 [shape = 'u8[512]{0}', space=vmem, size = 0x400, scoped, tag = 'output window, operand 0, single buffered']
    #allocation3 [shape = 's32[1]{0}', space=sflag, size = 0x4, scoped, tag = 'scoped memory for label_smoothing_loss.1']
    %7 = vsyncpa [#allocation3], 0
    // Predicated region
    $region2: #{label_smoothing_loss.1} parent=1 // pred_check
      _
    $region3: #{label_smoothing_loss.1} parent=1 // pred_check_branch
      %9 = sbr.rel (0) target = $region5
    $region4: #{label_smoothing_loss.1} parent=1 // pred_region
      _
    $region5: #{label_smoothing_loss.1} parent=1 // pred_fallthru
      _
    // Predicated region
    $region6: #{label_smoothing_loss.1} parent=1 // pred_check
      _
    $region7: #{label_smoothing_loss.1} parent=1 // pred_check_branch
      %11 = sbr.rel (0) target = $region9
    $region8: #{label_smoothing_loss.1} parent=1 // pred_region
      _
    $region9: #{label_smoothing_loss.1} parent=1 // pred_fallthru
      _
    %v12 = vld [vmem:[%s0] sm:$0xff]
    %v13 = vlaneseq
    %v14 = vand.u32 %v13, 127
    %v15 = vlaneseq
    %v16 = vshrl.u32 %v15, 7
    %s17 = smul.u32 0, 8
    %v18 = vstv %s17
    %v19 = vadd.s32 %v16, %v18
    %vm20 = vcmp.lt.s32.totalorder %v14, 5
    %vm21 = vcmp.lt.s32.totalorder %v19, 6
    %vm22 = vmand %vm20, %vm21
    %v23 = vsel %vm20, %v12, -1e+30
    %24 = vmax.xlane.f32.xlu0 %v23
    %v25 = vpop.xlane.xlu0 %24
    %v26 = vsub.f32 %v23, %v25
    %v27 = vmul.f32 %v26, 1.442695
    %v28 = vpow.pop %v27
    %29 = vadd.xlane.f32.xlu0 %v28
    %v30 = vpop.xlane.xlu0 %29
    %v31 = vsub.f32 %v12, %v25
    %v32 = vlog2.pop %v30
    %v33 = vmul.f32 %v32, 0.6931472
    %v34 = vsub.f32 %v31, %v33
    %v35 = vld [vmem:[%s1] sm:$0xff]
    %36 = vset.pattern.permute.xlu0 0
    %37 = vperm.xlu0 %36, %v35
    %v38 = vpop.permute.xlu0 %37
    %vm39 = vcmp.eq.s32.totalorder %v14, %v38
    %v40 = vsel %vm39, 0.9, 0.025
    %v41 = vmul.f32 %v40, %v34
    %v42 = vsel %vm22, %v41, 0.0
    %43 = vadd.xlane.f32.xlu0 %v42
    %v44 = vpop.xlane.xlu0 %43
    %v45 = vrot.slane %v44, 4
    %v46 = vadd.f32 %v44, %v45
    %v47 = vrot.slane %v46, 2
    %v48 = vadd.f32 %v46, %v47
    %v49 = vrot.slane %v48, 1
    %v50 = vadd.f32 %v48, %v49
    %p51 = scmp.eq.s32.totalorder 0, 0
    // Predicated region
    $region10: #{label_smoothing_loss.1} parent=1 // pred_check
      %p52 = pneg %p51
    $region11: #{label_smoothing_loss.1} parent=1 // pred_check_branch
      %54 = sbr.rel (%p52) target = $region13
    $region12: #{label_smoothing_loss.1} parent=1 // pred_region
      %vm55 = vcmask 0
      %56 = vst.msk [vmem:[#allocation2] sm:$0x1] %vm55, 0.0
    $region13: #{label_smoothing_loss.1} parent=1 // pred_fallthru
      _
    %v57 = vld [vmem:[#allocation2] sm:$0x1]
    %v58 = vmul.f32 %v50, -0.16666667
    %v59 = vadd.f32 %v57, %v58
    %vm60 = vcmask 0
    %61 = vst.msk [vmem:[#allocation2] sm:$0x1] %vm60, %v59
    // Predicated region
    $region14: #{label_smoothing_loss.1} parent=1 // pred_check
      _
    $region15: #{label_smoothing_loss.1} parent=1 // pred_check_branch
      %63 = sbr.rel (0) target = $region17
    $region16: #{label_smoothing_loss.1} parent=1 // pred_region
      %s65 = ssub.s32 16, 16
      %66 = vsyncadd [#allocation3], %s65
      %s68 = sshll.u32 [#allocation2], 4
      %s69 = int_to_ptr.vmem [resolvable:$true] %s68
      %71 = dma.vmem_to_hbm [thread:$0]  %s69, 16, %s2, [#allocation3]
    $region17: #{label_smoothing_loss.1} parent=1 // pred_fallthru
      _
    // Predicated region
    $region18: #{label_smoothing_loss.1} parent=1 // pred_check
      _
    $region19: #{label_smoothing_loss.1} parent=1 // pred_check_branch
      %73 = sbr.rel (0) target = $region21
    $region20: #{label_smoothing_loss.1} parent=1 // pred_region
      %74 = dma.done [#allocation3], 16
    $region21: #{label_smoothing_loss.1} parent=1 // pred_fallthru
      _
    %75 = vsyncpa [#allocation3], 1

</llo_original>
